<compile_context>
chip_gen: v6e
topology: v6e:2x2x1
jax: 0.10.0
libtpu: 0.0.40
codegen_flags: <defaults>
</compile_context>

<pallas_src>
import jax
import jax.numpy as jnp
from jax.experimental import pallas as pl
from jax.experimental.pallas import tpu as pltpu

IN_FEATURES = 3
OUT_FEATURES = 1
LANES = 128


def linear_kernel(x_ref, w_ref, b_ref, o_ref):
    # x_ref: (3, TR, 128) f32 VMEM -- per-feature, batch dense over sublanes+lanes
    # w_ref: (3,) f32 SMEM   (flattened PyTorch Linear weight)
    # b_ref: (1,) f32 SMEM
    # o_ref: (TR, 128) f32 VMEM -- lane-dense output slab (unmasked full-width vst)
    x0 = x_ref[0]
    x1 = x_ref[1]
    x2 = x_ref[2]
    o_ref[...] = x0 * w_ref[0] + x1 * w_ref[1] + x2 * w_ref[2] + b_ref[0]


def _round_up(v, m):
    return ((v + m - 1) // m) * m


def my_linear_forward(x, weight, bias, *, block_rows=512, min_pallas_n=2048):
    """y = x @ weight.T + bias (PyTorch nn.Linear(3, 1) forward).

    x: (N, 3) f32, weight: (1, 3) f32, bias: (1,) f32 -> (N, 1) f32.
    """
    n, k = x.shape
    assert k == IN_FEATURES
    assert weight.shape == (OUT_FEATURES, IN_FEATURES)
    assert bias.shape == (OUT_FEATURES,)

    # Tiny batches: pallas_call fixed cost + layout plumbing dominates; plain
    # XLA fusion is strictly faster there.
    if n < min_pallas_n:
        return (x @ weight.T + bias).astype(jnp.float32)

    # Lane-dense tiling: the batch becomes `rows` dense rows of 128 lanes.
    rows = pl.cdiv(n, LANES)
    tr = min(_round_up(block_rows, 8), _round_up(rows, 8))   # sublane-aligned
    num_tiles = pl.cdiv(rows, tr)
    rows_pad = num_tiles * tr
    n_pad = rows_pad * LANES

    # Pad batch, then present x as (3, rows_pad, 128): feature-major, batch
    # dense along sublanes+lanes.  Padded rows produce bias-only garbage that
    # is sliced off below.
    xp = x if n_pad == n else jnp.pad(x, ((0, n_pad - n), (0, 0)))
    xt = xp.T.reshape(IN_FEATURES, rows_pad, LANES)

    w_flat = weight.reshape(IN_FEATURES)   # 1-D SMEM ref: 16 B, not 4 KiB

    out = pl.pallas_call(
        linear_kernel,
        out_shape=jax.ShapeDtypeStruct((rows_pad, LANES), jnp.float32),
        grid=(num_tiles,),
        in_specs=[
            # (3, tr, 128): leading dim full; last two dims (8k, 128)-aligned.
            pl.BlockSpec((IN_FEATURES, tr, LANES), lambda i: (0, i, 0)),
            # Weights/bias resident in SMEM across the whole grid.
            pl.BlockSpec(memory_space=pltpu.MemorySpace.SMEM),
            pl.BlockSpec(memory_space=pltpu.MemorySpace.SMEM),
        ],
        out_specs=pl.BlockSpec((tr, LANES), lambda i: (i, 0)),
        compiler_params=pltpu.CompilerParams(
            dimension_semantics=("parallel",),  # batch axis: shard across TCs
        ),
    )(xt, w_flat, bias)

    return out.reshape(n_pad, 1)[:n]


if __name__ == "__main__":
    key = jax.random.PRNGKey(0)
    k_w, k_b, k_x = jax.random.split(key, 3)

    # Deterministic parameter init mimicking nn.Linear(3, 1):
    # uniform(-1/sqrt(in_features), 1/sqrt(in_features)).
    bound = 1.0 / jnp.sqrt(jnp.float32(IN_FEATURES))
    w = jax.random.uniform(k_w, (OUT_FEATURES, IN_FEATURES), jnp.float32, -bound, bound)
    b = jax.random.uniform(k_b, (OUT_FEATURES,), jnp.float32, -bound, bound)

    # 1) The module's multivariable regression data (5, 3): tiny batch, goes
    #    through the plain-JAX fast path.
    x_small = jnp.array(
        [[73.0, 80.0, 75.0],
         [93.0, 88.0, 93.0],
         [89.0, 91.0, 90.0],
         [96.0, 98.0, 100.0],
         [73.0, 66.0, 70.0]],
        dtype=jnp.float32,
    )
    y_small = my_linear_forward(x_small, w, b)
    jax.block_until_ready(y_small)
    assert y_small.shape == (5, 1)
    assert jnp.allclose(y_small, x_small @ w.T + b, rtol=1e-5, atol=1e-3)

    # 2) Pallas path, single grid step (N=4096 -> 32 dense (x,128) rows).
    x_big = jax.random.uniform(k_x, (4096, IN_FEATURES), jnp.float32, 0.0, 100.0)
    y_big = my_linear_forward(x_big, w, b, min_pallas_n=0)
    jax.block_until_ready(y_big)
    assert y_big.shape == (4096, 1)
    assert jnp.allclose(y_big, x_big @ w.T + b, rtol=1e-5, atol=1e-3)

    # 3) Pallas path, multi-step grid with a ragged batch (exercises padding
    #    plus several lane-dense tiles): N=3000, block_rows=8 -> grid=(3,).
    x_rag = x_big[:3000]
    y_rag = my_linear_forward(x_rag, w, b, block_rows=8, min_pallas_n=0)
    jax.block_until_ready(y_rag)
    assert y_rag.shape == (3000, 1)
    assert jnp.allclose(y_rag, x_rag @ w.T + b, rtol=1e-5, atol=1e-3)

    print("KERNEL_OK")
</pallas_src>

<mosaic_0001>
module attributes {stable_mosaic.version = 11 : i64} {
  func.func @linear_kernel(%arg0: i32, %arg1: memref<3x32x128xf32, #tpu.memory_space<vmem>>, %arg2: memref<3xf32, #tpu.memory_space<smem>>, %arg3: memref<1xf32, #tpu.memory_space<smem>>, %arg4: memref<32x128xf32, #tpu.memory_space<vmem>>) attributes {dimension_semantics = [#tpu.dimension_semantics<parallel>], iteration_bounds = array<i64: 1>, scalar_prefetch = 0 : i64, scratch_operands = 0 : i64, tpu.core_type = #tpu.core_type<tc>, window_params = [{transform_indices = @transform_0, window_bounds = array<i64: 3, 32, 128>}, {transform_indices = @transform_1, window_bounds = array<i64: 3>}, {transform_indices = @transform_2, window_bounds = array<i64: 1>}, {transform_indices = @transform_3, window_bounds = array<i64: 32, 128>}]} {
    %c0 = arith.constant 0 : index
    %c0_0 = arith.constant 0 : index
    %c0_1 = arith.constant 0 : index
    %0 = vector.load %arg1[%c0, %c0_0, %c0_1] : memref<3x32x128xf32, #tpu.memory_space<vmem>>, vector<1x32x128xf32>
    %1 = vector.shape_cast %0 : vector<1x32x128xf32> to vector<32x128xf32>
    %c1 = arith.constant 1 : index
    %c0_2 = arith.constant 0 : index
    %c0_3 = arith.constant 0 : index
    %2 = vector.load %arg1[%c1, %c0_2, %c0_3] : memref<3x32x128xf32, #tpu.memory_space<vmem>>, vector<1x32x128xf32>
    %3 = vector.shape_cast %2 : vector<1x32x128xf32> to vector<32x128xf32>
    %c2 = arith.constant 2 : index
    %c0_4 = arith.constant 0 : index
    %c0_5 = arith.constant 0 : index
    %4 = vector.load %arg1[%c2, %c0_4, %c0_5] : memref<3x32x128xf32, #tpu.memory_space<vmem>>, vector<1x32x128xf32>
    %5 = vector.shape_cast %4 : vector<1x32x128xf32> to vector<32x128xf32>
    %c0_6 = arith.constant 0 : index
    %6 = memref.load %arg2[%c0_6] : memref<3xf32, #tpu.memory_space<smem>>
    %7 = vector.broadcast %6 : f32 to vector<32x128xf32>
    %8 = arith.mulf %1, %7 : vector<32x128xf32>
    %c1_7 = arith.constant 1 : index
    %9 = memref.load %arg2[%c1_7] : memref<3xf32, #tpu.memory_space<smem>>
    %10 = vector.broadcast %9 : f32 to vector<32x128xf32>
    %11 = arith.mulf %3, %10 : vector<32x128xf32>
    %12 = arith.addf %8, %11 : vector<32x128xf32>
    %c2_8 = arith.constant 2 : index
    %13 = memref.load %arg2[%c2_8] : memref<3xf32, #tpu.memory_space<smem>>
    %14 = vector.broadcast %13 : f32 to vector<32x128xf32>
    %15 = arith.mulf %5, %14 : vector<32x128xf32>
    %16 = arith.addf %12, %15 : vector<32x128xf32>
    %c0_9 = arith.constant 0 : index
    %17 = memref.load %arg3[%c0_9] : memref<1xf32, #tpu.memory_space<smem>>
    %18 = vector.broadcast %17 : f32 to vector<32x128xf32>
    %19 = arith.addf %16, %18 : vector<32x128xf32>
    %c0_10 = arith.constant 0 : index
    %c0_11 = arith.constant 0 : index
    %20 = vector.load %arg4[%c0_10, %c0_11] : memref<32x128xf32, #tpu.memory_space<vmem>>, vector<32x128xf32>
    tpu.vector_store %arg4[%c0_10, %c0_11], %19 {strides = array<i32>} : memref<32x128xf32, #tpu.memory_space<vmem>>, vector<32x128xf32>,
    return
  }
  func.func @transform_0(%arg0: i32) -> (i32, i32, i32) {
    %c0_i32 = arith.constant 0 : i32
    %c0_i32_0 = arith.constant 0 : i32
    %c0_i32_1 = arith.constant 0 : i32
    return %c0_i32, %arg0, %c0_i32_0 : i32, i32, i32
  }
  func.func @transform_1(%arg0: i32) -> i32 {
    %c0_i32 = arith.constant 0 : i32
    %c0_i32_0 = arith.constant 0 : i32
    return %c0_i32 : i32
  }
  func.func @transform_2(%arg0: i32) -> i32 {
    %c0_i32 = arith.constant 0 : i32
    %c0_i32_0 = arith.constant 0 : i32
    return %c0_i32 : i32
  }
  func.func @transform_3(%arg0: i32) -> (i32, i32) {
    %c0_i32 = arith.constant 0 : i32
    %c0_i32_0 = arith.constant 0 : i32
    return %arg0, %c0_i32 : i32, i32
  }
}

</mosaic_0001>

<llo_original>
// kernel: tpu_custom_call.1
$region0: #{tpu_custom_call.1}
  #allocation0 [shape = 'u32[]', space=smem, size = 0x4, offset = 0x4, fixed_abs, tag = 'smem constant byte address 0x4 - core index']
  #allocation1 [shape = 'u32[144,128]{1,0:T(1,128)}', space=vmem, size = 0x12000, scoped, tag = 'internal scratch']
  #allocation2 [shape = 'f32[1]{0:T(128)S(6)}', space=smem, size = 0x200, scoped, tag = 'scoped memory for tpu_custom_call.1']
  %s0 = inlined_call_operand.hbm [shape: f32[3,32,128], index: 0, kind: input, shape index: {}]
  %s1 = inlined_call_operand.vmem [shape: f32[3], index: 1, kind: input, shape index: {}]
  %s2 = inlined_call_operand.<no memory space> [shape: f32[1], index: 2, kind: input, shape index: {}]
  %s3 = inlined_call_operand.hbm [shape: f32[32,128], index: 3, kind: output, shape index: {}]
  %s4 = sld [smem:[#allocation0]]
  $region30: #{tpu_custom_call.1} parent=0
    _
  %s6 = ssub.s32 1, %s4
  %s7 = scalar_select 0, %s6, %s4
  %8 = sst [smem:[#allocation2]] %s2
  $region1: #{tpu_custom_call.1} parent=0
    #allocation3 [shape = 'u8[49152]{0}', space=vmem, size = 0xc000, scoped, tag = 'input window, operand 0, single buffered']
    #allocation4 [shape = 's32[1]{0}', space=sflag, size = 0x4, scoped, tag = 'scoped memory for tpu_custom_call.1']
    #allocation5 [shape = 's32[1]{0}', space=sflag, size = 0x4, scoped, tag = 'scoped memory for tpu_custom_call.1']
    #allocation6 [shape = 's32[1]{0}', space=sflag, size = 0x4, scoped, tag = 'scoped memory for tpu_custom_call.1']
    #allocation7 [shape = 'u8[512]{0}', space=smem, size = 0x200, scoped, tag = 'input window, operand 1, single buffered']
    #allocation8 [shape = 'u8[16384]{0}', space=vmem, size = 0x4000, scoped, tag = 'output window, operand 0, single buffered']
    %9 = vsyncpa [#allocation4], 0
    %10 = vsyncpa [#allocation6], 0
    %11 = vsyncpa [#allocation5], 0
    // Predicated region
    $region2: #{tpu_custom_call.1} parent=1 // pred_check
      _
    $region3: #{tpu_custom_call.1} parent=1 // pred_check_branch
      %13 = sbr.rel (0) target = $region5
    $region4: #{tpu_custom_call.1} parent=1 // pred_region
      %s15 = ssub.s32 1536, 1536
      %16 = vsyncadd [#allocation4], %s15
      %s17 = sshll.u32 [#allocation3], 4
      %s18 = int_to_ptr.vmem [resolvable:$true] %s17
      %23 = dma.hbm_to_vmem [thread:$0]  %s0, 1536, %s18, [#allocation4], 128, 128, 8
    $region5: #{tpu_custom_call.1} parent=1 // pred_fallthru
      _
    // Predicated region
    $region6: #{tpu_custom_call.1} parent=1 // pred_check
      _
    $region7: #{tpu_custom_call.1} parent=1 // pred_check_branch
      %25 = sbr.rel (0) target = $region9
    $region8: #{tpu_custom_call.1} parent=1 // pred_region
      %s27 = ssub.s32 16, 16
      %28 = vsyncadd [#allocation6], %s27
      %s30 = sshll.u32 %s1, 4
      %s31 = int_to_ptr.vmem [resolvable:$true] %s30
      %33 = dma.vmem_to_smem %s31, 16, [#allocation7], [#allocation6]
    $region9: #{tpu_custom_call.1} parent=1 // pred_fallthru
      _
    // Predicated region
    $region10: #{tpu_custom_call.1} parent=1 // pred_check
      _
    $region11: #{tpu_custom_call.1} parent=1 // pred_check_branch
      %35 = sbr.rel (0) target = $region13
    $region12: #{tpu_custom_call.1} parent=1 // pred_region
      _
    $region13: #{tpu_custom_call.1} parent=1 // pred_fallthru
      _
    // Predicated region
    $region14: #{tpu_custom_call.1} parent=1 // pred_check
      _
    $region15: #{tpu_custom_call.1} parent=1 // pred_check_branch
      %37 = sbr.rel (0) target = $region17
    $region16: #{tpu_custom_call.1} parent=1 // pred_region
      %38 = dma.done [#allocation4], 1536
    $region17: #{tpu_custom_call.1} parent=1 // pred_fallthru
      _
    // Predicated region
    $region18: #{tpu_custom_call.1} parent=1 // pred_check
      _
    $region19: #{tpu_custom_call.1} parent=1 // pred_check_branch
      %40 = sbr.rel (0) target = $region21
    $region20: #{tpu_custom_call.1} parent=1 // pred_region
      %41 = dma.done [#allocation6], 16
    $region21: #{tpu_custom_call.1} parent=1 // pred_fallthru
      _
    %42 = sfence
    %v43 = vld [vmem:[#allocation3] sm:$0xff]
    %v44 = vld [vmem:[#allocation3 + $0x8] sm:$0xff]
    %v45 = vld [vmem:[#allocation3 + $0x10] sm:$0xff]
    %v46 = vld [vmem:[#allocation3 + $0x18] sm:$0xff]
    %s47 = scalar_lea.vmem [#allocation3], 32
    %v48 = vld [vmem:[%s47] sm:$0xff]
    %v49 = vld [vmem:[%s47 + $0x8] sm:$0xff]
    %v50 = vld [vmem:[%s47 + $0x10] sm:$0xff]
    %v51 = vld [vmem:[%s47 + $0x18] sm:$0xff]
    %s52 = scalar_lea.vmem [#allocation3], 64
    %v53 = vld [vmem:[%s52] sm:$0xff]
    %v54 = vld [vmem:[%s52 + $0x8] sm:$0xff]
    %v55 = vld [vmem:[%s52 + $0x10] sm:$0xff]
    %v56 = vld [vmem:[%s52 + $0x18] sm:$0xff]
    %s57 = sld [smem:[#allocation7]]
    %v58 = vstv %s57
    %v59 = vmul.f32 %v43, %v58
    %v60 = vmul.f32 %v44, %v58
    %v61 = vmul.f32 %v45, %v58
    %v62 = vmul.f32 %v46, %v58
    %s63 = sld [smem:[#allocation7 + $0x1]]
    %v64 = vstv %s63
    %v65 = vmul.f32 %v48, %v64
    %v66 = vmul.f32 %v49, %v64
    %v67 = vmul.f32 %v50, %v64
    %v68 = vmul.f32 %v51, %v64
    %v69 = vadd.f32 %v59, %v65
    %v70 = vadd.f32 %v60, %v66
    %v71 = vadd.f32 %v61, %v67
    %v72 = vadd.f32 %v62, %v68
    %s73 = sld [smem:[#allocation7 + $0x2]]
    %v74 = vstv %s73
    %v75 = vmul.f32 %v53, %v74
    %v76 = vmul.f32 %v54, %v74
    %v77 = vmul.f32 %v55, %v74
    %v78 = vmul.f32 %v56, %v74
    %v79 = vadd.f32 %v69, %v75
    %v80 = vadd.f32 %v70, %v76
    %v81 = vadd.f32 %v71, %v77
    %v82 = vadd.f32 %v72, %v78
    %s83 = sld [smem:[#allocation2]]
    %v84 = vstv %s83
    %v85 = vadd.f32 %v79, %v84
    %v86 = vadd.f32 %v80, %v84
    %v87 = vadd.f32 %v81, %v84
    %v88 = vadd.f32 %v82, %v84
    %89 = vst [vmem:[#allocation8] sm:$0xff] %v85
    %90 = vst [vmem:[#allocation8 + $0x8] sm:$0xff] %v86
    %91 = vst [vmem:[#allocation8 + $0x10] sm:$0xff] %v87
    %92 = vst [vmem:[#allocation8 + $0x18] sm:$0xff] %v88
    // Predicated region
    $region22: #{tpu_custom_call.1} parent=1 // pred_check
      _
    $region23: #{tpu_custom_call.1} parent=1 // pred_check_branch
      %94 = sbr.rel (0) target = $region25
    $region24: #{tpu_custom_call.1} parent=1 // pred_region
      %s96 = ssub.s32 512, 512
      %97 = vsyncadd [#allocation5], %s96
      %s98 = sshll.u32 [#allocation8], 4
      %s99 = int_to_ptr.vmem [resolvable:$true] %s98
      %104 = dma.vmem_to_hbm [thread:$0]  %s99, 512, %s3, [#allocation5], 128, 128, 8
    $region25: #{tpu_custom_call.1} parent=1 // pred_fallthru
      _
    // Predicated region
    $region26: #{tpu_custom_call.1} parent=1 // pred_check
      _
    $region27: #{tpu_custom_call.1} parent=1 // pred_check_branch
      %106 = sbr.rel (0) target = $region29
    $region28: #{tpu_custom_call.1} parent=1 // pred_region
      %107 = dma.done [#allocation5], 512
    $region29: #{tpu_custom_call.1} parent=1 // pred_fallthru
      _
    %108 = vsyncpa [#allocation4], 1
    %109 = vsyncpa [#allocation5], 1
    %110 = vsyncpa [#allocation6], 1

</llo_original>
